<compile_context>
chip_gen: v7x
topology: tpu7x:2x2x1
jax: 0.10.0
libtpu: 0.0.40
codegen_flags: <defaults>
</compile_context>

<pallas_src>
import math

import jax
import jax.numpy as jnp
from jax.experimental import pallas as pl
from jax.experimental.pallas import tpu as pltpu


def _round_up(n, m):
    return (n + m - 1) // m * m


def _pad_dim(d, tile, align):
    """Padded extent: multiple of `tile` if d >= tile, else d rounded to `align`."""
    return _round_up(d, tile) if d >= tile else _round_up(d, align)


def _dimension_semantics(grid_m):
    """Explicitly split the M grid axis across v7x's two TensorCores; plain
    parallel/arbitrary elsewhere (megacore no-op on single-TC v5e/v6e)."""
    try:
        kind = jax.devices()[0].device_kind.lower()
    except Exception:
        kind = ""
    if "v7" in kind and grid_m % 2 == 0:
        return (pltpu.CORE_PARALLEL, pltpu.PARALLEL, pltpu.ARBITRARY)
    return ("parallel", "parallel", "arbitrary")


def bitlinear_matmul_kernel(s_ref, x_ref, w_ref, o_ref, acc_ref):
    """One (tm, tn) output tile, accumulated over the K grid axis.

    s_ref:   SMEM (1,) f32  -> out_scale = w_mean * scale
    x_ref:   VMEM (tm, tk)  bf16 activation tile
    w_ref:   VMEM (tk, tn)  bf16 pre-quantized ternary weight tile (K, N layout)
    o_ref:   VMEM (tm, tn)  output tile
    acc_ref: VMEM (tm, tn)  f32 accumulator scratch
    """
    k = pl.program_id(2)

    @pl.when(k == 0)
    def _():
        acc_ref[...] = jnp.zeros_like(acc_ref)

    # Straight bf16 MXU matmul with f32 accumulation; no transpose/relayout
    # needed because the weight was pre-transposed to (K, N) at prep time.
    acc_ref[...] += jnp.dot(x_ref[...], w_ref[...],
                            preferred_element_type=jnp.float32)

    # Epilogue: apply w_mean * scale once per output tile, cast, store.
    @pl.when(k == pl.num_programs(2) - 1)
    def _():
        o_ref[...] = (acc_ref[...] * s_ref[0]).astype(o_ref.dtype)


def prepare_bitlinear(weight, scale, *, tn=512, tk=512):
    """One-time weight preparation. Cache the result across forwards.

    Returns:
      w_qt      (Kp, Np) bf16 : ternary-quantized weight, transposed + padded
      out_scale (1,)     f32  : w_mean * scale (applied in the kernel epilogue)
    """
    N, K = weight.shape
    w = weight.astype(jnp.float32)
    # Global abs-mean MUST be over the full (unpadded) weight.
    w_mean = jnp.mean(jnp.abs(w))
    w_q = jnp.clip(jnp.round(w / (w_mean + 1e-5)), -1.0, 1.0)   # ternary, exact in bf16
    w_qt = w_q.T.astype(jnp.bfloat16)                           # (K, N) for the matmul
    out_scale = (w_mean * scale.reshape(())).astype(jnp.float32).reshape(1)

    Kp = _pad_dim(K, tk, 128)
    Np = _pad_dim(N, tn, 128)
    if (Kp, Np) != (K, N):
        # Zero-padded K rows / N cols contribute nothing to valid outputs.
        w_qt = jnp.pad(w_qt, ((0, Kp - K), (0, Np - N)))
    return w_qt, out_scale


def bitlinear_apply(x, w_qt, out_scale, out_features, *, tm=512, tn=512, tk=512):
    """BitLinear forward using a pre-quantized weight from prepare_bitlinear."""
    *lead, K = x.shape
    Kp, Np = w_qt.shape
    assert K <= Kp and out_features <= Np

    # MXU is fed bf16 regardless; casting here halves x HBM traffic and VMEM.
    x2 = x.reshape(-1, K).astype(jnp.bfloat16)
    M = x2.shape[0]

    tm = min(tm, _round_up(M, 16))   # bf16 sublane packing: multiples of 16
    tn = min(tn, Np)
    tk = min(tk, Kp)
    assert Np % tn == 0 and Kp % tk == 0, (
        "prepare_bitlinear and bitlinear_apply must use matching tn/tk targets")
    Mp = _round_up(M, tm)

    if (Mp, Kp) != (M, K):
        x2 = jnp.pad(x2, ((0, Mp - M), (0, Kp - K)))

    grid = (Mp // tm, Np // tn, Kp // tk)

    # VMEM budget at 512x512x512 bf16: 2*(0.5+0.5) MiB inputs (double-buffered)
    # + 2 MiB output + 1 MiB f32 accumulator ~= 5 MiB -> fits the scoped
    # defaults on v5e (16 MiB), v6e (32 MiB) and v7x (32 MiB), no override needed.
    out = pl.pallas_call(
        bitlinear_matmul_kernel,
        out_shape=jax.ShapeDtypeStruct((Mp, Np), x.dtype),
        grid_spec=pltpu.PrefetchScalarGridSpec(
            num_scalar_prefetch=0,
            grid=grid,
            in_specs=[
                pl.BlockSpec(memory_space=pltpu.MemorySpace.SMEM),   # out_scale
                pl.BlockSpec((tm, tk), lambda i, j, k: (i, k)),      # x tile
                pl.BlockSpec((tk, tn), lambda i, j, k: (k, j)),      # W_q^T tile
            ],
            out_specs=pl.BlockSpec((tm, tn), lambda i, j, k: (i, j)),
            scratch_shapes=[pltpu.VMEM((tm, tn), jnp.float32)],
        ),
        compiler_params=pltpu.CompilerParams(
            dimension_semantics=_dimension_semantics(grid[0])),
    )(out_scale, x2, w_qt)

    return out[:M, :out_features].reshape(*lead, out_features)


def bitlinear(x, weight, scale, **tiles):
    """Convenience one-shot forward. For repeated forwards with the same
    weight, call prepare_bitlinear once and reuse (w_qt, out_scale)."""
    w_qt, out_scale = prepare_bitlinear(weight, scale)
    return bitlinear_apply(x, w_qt, out_scale, weight.shape[0], **tiles)


def bitlinear_ref(x, weight, scale):
    """Pure-JAX f32 reference of the PyTorch forward."""
    w_mean = jnp.mean(jnp.abs(weight))
    w_q = jnp.clip(jnp.round(weight / (w_mean + 1e-5)), -1.0, 1.0)
    w_eff = w_q * w_mean * scale[0]
    return jnp.dot(x, w_eff.T, precision=jax.lax.Precision.HIGHEST)


if __name__ == "__main__":
    key = jax.random.PRNGKey(0)
    kx, kw = jax.random.split(key)

    in_features, out_features = 32, 64
    batch, seq = 2, 8

    # kaiming_uniform_(a=sqrt(5)) on (out, in) => U(-1/sqrt(in), 1/sqrt(in))
    bound = 1.0 / math.sqrt(in_features)
    weight = jax.random.uniform(kw, (out_features, in_features),
                                jnp.float32, -bound, bound)
    scale = jnp.ones((1,), jnp.float32)
    x = jax.random.normal(kx, (batch, seq, in_features), jnp.float32)

    # One-time weight prep (cache across forwards), then the Pallas matmul.
    w_qt, out_scale = prepare_bitlinear(weight, scale)
    y = bitlinear_apply(x, w_qt, out_scale, out_features)
    jax.block_until_ready(y)
    assert y.shape == (batch, seq, out_features)

    # 1) Check against the exact f32 reference. The kernel feeds the MXU in
    #    bf16 (W_q is exact in bf16, x is truncated), hence bf16-level tol.
    y_ref = bitlinear_ref(x, weight, scale)
    assert jnp.allclose(y, y_ref, atol=2e-2, rtol=2e-2), \
        float(jnp.max(jnp.abs(y - y_ref)))

    # 2) Tighter check against a reference with the identical bf16 feed
    #    (exact ternary weights, f32 accumulation, f32 epilogue rescale).
    w_mean = jnp.mean(jnp.abs(weight))
    w_q = jnp.clip(jnp.round(weight / (w_mean + 1e-5)), -1.0, 1.0)
    y_match = jnp.dot(
        x.reshape(-1, in_features).astype(jnp.bfloat16),
        w_q.T.astype(jnp.bfloat16),
        preferred_element_type=jnp.float32,
    ) * (w_mean * scale[0])
    assert jnp.allclose(y.reshape(-1, out_features), y_match,
                        atol=1e-3, rtol=1e-3)

    # 3) One-shot convenience path matches the cached-prep path exactly.
    y2 = bitlinear(x, weight, scale)
    assert jnp.allclose(y2, y, atol=1e-6, rtol=1e-6)

    print("KERNEL_OK")
</pallas_src>

<mosaic_0001>
module attributes {stable_mosaic.version = 11 : i64} {
  func.func @bitlinear_matmul_kernel(%arg0: i32, %arg1: i32, %arg2: i32, %arg3: memref<1xf32, #tpu.memory_space<smem>>, %arg4: memref<16x128xbf16, #tpu.memory_space<vmem>>, %arg5: memref<128x128xbf16, #tpu.memory_space<vmem>>, %arg6: memref<16x128xf32, #tpu.memory_space<vmem>>, %arg7: memref<16x128xf32, #tpu.memory_space<vmem>>) attributes {dimension_semantics = [#tpu.dimension_semantics<parallel>, #tpu.dimension_semantics<parallel>, #tpu.dimension_semantics<arbitrary>], iteration_bounds = array<i64: 1, 1, 1>, scalar_prefetch = 0 : i64, scratch_operands = 1 : i64, tpu.core_type = #tpu.core_type<tc>, window_params = [{transform_indices = @transform_0, window_bounds = array<i64: 1>}, {transform_indices = @transform_1, window_bounds = array<i64: 16, 128>}, {transform_indices = @transform_2, window_bounds = array<i64: 128, 128>}, {transform_indices = @transform_3, window_bounds = array<i64: 16, 128>}]} {
    %c0_i32 = arith.constant 0 : i32
    %0 = arith.cmpi eq, %arg2, %c0_i32 : i32
    %1 = arith.extui %0 : i1 to i32
    %c0_i32_0 = arith.constant 0 : i32
    %2 = arith.cmpi ne, %1, %c0_i32_0 : i32
    scf.if %2 {
      %cst_10 = arith.constant 0.000000e+00 : f32
      %12 = vector.broadcast %cst_10 : f32 to vector<16x128xf32>
      %c0_11 = arith.constant 0 : index
      %c0_12 = arith.constant 0 : index
      %13 = vector.load %arg7[%c0_11, %c0_12] : memref<16x128xf32, #tpu.memory_space<vmem>>, vector<16x128xf32>
      tpu.vector_store %arg7[%c0_11, %c0_12], %12 {strides = array<i32>} : memref<16x128xf32, #tpu.memory_space<vmem>>, vector<16x128xf32>,
    } else {
    }
    %c0 = arith.constant 0 : index
    %c0_1 = arith.constant 0 : index
    %3 = vector.load %arg7[%c0, %c0_1] : memref<16x128xf32, #tpu.memory_space<vmem>>, vector<16x128xf32>
    %c0_2 = arith.constant 0 : index
    %c0_3 = arith.constant 0 : index
    %4 = vector.load %arg4[%c0_2, %c0_3] : memref<16x128xbf16, #tpu.memory_space<vmem>>, vector<16x128xbf16>
    %c0_4 = arith.constant 0 : index
    %c0_5 = arith.constant 0 : index
    %5 = vector.load %arg5[%c0_4, %c0_5] : memref<128x128xbf16, #tpu.memory_space<vmem>>, vector<128x128xbf16>
    %cst = arith.constant dense<0.000000e+00> : vector<16x128xf32>
    %6 = tpu.matmul %4, %5, %cst {dimension_numbers = #tpu.dot_dimension_numbers<[1], [0], [0], [1], [0, 0, 1, 1], [], []>} : vector<16x128xbf16>, vector<128x128xbf16>, vector<16x128xf32> -> vector<16x128xf32>
    %7 = arith.addf %3, %6 : vector<16x128xf32>
    %c0_6 = arith.constant 0 : index
    %c0_7 = arith.constant 0 : index
    %8 = vector.load %arg7[%c0_6, %c0_7] : memref<16x128xf32, #tpu.memory_space<vmem>>, vector<16x128xf32>
    tpu.vector_store %arg7[%c0_6, %c0_7], %7 {strides = array<i32>} : memref<16x128xf32, #tpu.memory_space<vmem>>, vector<16x128xf32>,
    %c0_i32_8 = arith.constant 0 : i32
    %9 = arith.cmpi eq, %arg2, %c0_i32_8 : i32
    %10 = arith.extui %9 : i1 to i32
    %c0_i32_9 = arith.constant 0 : i32
    %11 = arith.cmpi ne, %10, %c0_i32_9 : i32
    scf.if %11 {
      %c0_10 = arith.constant 0 : index
      %c0_11 = arith.constant 0 : index
      %12 = vector.load %arg7[%c0_10, %c0_11] : memref<16x128xf32, #tpu.memory_space<vmem>>, vector<16x128xf32>
      %c0_12 = arith.constant 0 : index
      %13 = memref.load %arg3[%c0_12] : memref<1xf32, #tpu.memory_space<smem>>
      %14 = vector.broadcast %13 : f32 to vector<16x128xf32>
      %15 = arith.mulf %12, %14 : vector<16x128xf32>
      %c0_13 = arith.constant 0 : index
      %c0_14 = arith.constant 0 : index
      %16 = vector.load %arg6[%c0_13, %c0_14] : memref<16x128xf32, #tpu.memory_space<vmem>>, vector<16x128xf32>
      tpu.vector_store %arg6[%c0_13, %c0_14], %15 {strides = array<i32>} : memref<16x128xf32, #tpu.memory_space<vmem>>, vector<16x128xf32>,
    } else {
    }
    return
  }
  func.func @transform_0(%arg0: i32, %arg1: i32, %arg2: i32) -> i32 {
    %c0_i32 = arith.constant 0 : i32
    %c0_i32_0 = arith.constant 0 : i32
    return %c0_i32 : i32
  }
  func.func @transform_1(%arg0: i32, %arg1: i32, %arg2: i32) -> (i32, i32) {
    %c0_i32 = arith.constant 0 : i32
    return %arg0, %arg2 : i32, i32
  }
  func.func @transform_2(%arg0: i32, %arg1: i32, %arg2: i32) -> (i32, i32) {
    %c0_i32 = arith.constant 0 : i32
    return %arg2, %arg1 : i32, i32
  }
  func.func @transform_3(%arg0: i32, %arg1: i32, %arg2: i32) -> (i32, i32) {
    %c0_i32 = arith.constant 0 : i32
    return %arg0, %arg1 : i32, i32
  }
}

</mosaic_0001>

<llo_original>
// kernel: tpu_custom_call.1
$region0: #{tpu_custom_call.1}
  #allocation0 [shape = 'u32[]', space=smem, size = 0x4, offset = 0x4, fixed_abs, tag = 'smem constant byte address 0x4 - core index']
  #allocation1 [shape = 'u32[144,128]{1,0:T(1,128)}', space=vmem, size = 0x12000, scoped, tag = 'internal scratch']
  #allocation2 [shape = 'f32[16,128]{1,0:T(8,128)}', space=vmem, size = 0x2000, scoped, tag = 'scratch operand']
  #allocation3 [shape = 'f32[1]{0:T(128)S(6)}', space=smem, size = 0x200, scoped, tag = 'scoped memory for tpu_custom_call.1']
  %s0 = inlined_call_operand.<no memory space> [shape: f32[1], index: 0, kind: input, shape index: {}]
  %s1 = inlined_call_operand.hbm [shape: bf16[16,128], index: 1, kind: input, shape index: {}]
  %s2 = inlined_call_operand.hbm [shape: bf16[128,128], index: 2, kind: input, shape index: {}]
  %s3 = inlined_call_operand.hbm [shape: f32[16,128], index: 3, kind: output, shape index: {}]
  %s4 = sld [smem:[#allocation0]]
  $region38: #{tpu_custom_call.1} parent=0
    _
  %s6 = ssub.s32 1, %s4
  %s7 = scalar_select 0, %s6, %s4
  %8 = sst [smem:[#allocation3]] %s0
  $region1: #{tpu_custom_call.1} parent=0
    #allocation4 [shape = 'u8[4096]{0}', space=vmem, size = 0x1000, scoped, tag = 'input window, operand 1, single buffered']
    #allocation5 [shape = 's32[1]{0}', space=sflag, size = 0x4, scoped, tag = 'scoped memory for tpu_custom_call.1']
    #allocation6 [shape = 's32[1]{0}', space=sflag, size = 0x4, scoped, tag = 'scoped memory for tpu_custom_call.1']
    #allocation7 [shape = 'u8[32768]{0}', space=vmem, size = 0x8000, scoped, tag = 'input window, operand 2, single buffered']
    #allocation8 [shape = 's32[1]{0}', space=sflag, size = 0x4, scoped, tag = 'scoped memory for tpu_custom_call.1']
    #allocation9 [shape = 'u8[8192]{0}', space=vmem, size = 0x2000, scoped, tag = 'output window, operand 0, single buffered']
    %9 = vsyncpa [#allocation5], 0
    %10 = vsyncpa [#allocation8], 0
    %11 = vsyncpa [#allocation6], 0
    // Predicated region
    $region2: #{tpu_custom_call.1} parent=1 // pred_check
      _
    $region3: #{tpu_custom_call.1} parent=1 // pred_check_branch
      %13 = sbr.rel (0) target = $region5
    $region4: #{tpu_custom_call.1} parent=1 // pred_region
      _
    $region5: #{tpu_custom_call.1} parent=1 // pred_fallthru
      _
    // Predicated region
    $region6: #{tpu_custom_call.1} parent=1 // pred_check
      _
    $region7: #{tpu_custom_call.1} parent=1 // pred_check_branch
      %15 = sbr.rel (0) target = $region9
    $region8: #{tpu_custom_call.1} parent=1 // pred_region
      %s17 = ssub.s32 128, 128
      %18 = vsyncadd [#allocation5], %s17
      %s19 = sshll.u32 [#allocation4], 4
      %s20 = int_to_ptr.vmem [resolvable:$true] %s19
      %25 = dma.hbm_to_vmem [thread:$0]  %s1, 128, %s20, [#allocation5], 64, 64, 4
    $region9: #{tpu_custom_call.1} parent=1 // pred_fallthru
      _
    // Predicated region
    $region10: #{tpu_custom_call.1} parent=1 // pred_check
      _
    $region11: #{tpu_custom_call.1} parent=1 // pred_check_branch
      %27 = sbr.rel (0) target = $region13
    $region12: #{tpu_custom_call.1} parent=1 // pred_region
      %s29 = ssub.s32 1024, 1024
      %30 = vsyncadd [#allocation8], %s29
      %s31 = sshll.u32 [#allocation7], 4
      %s32 = int_to_ptr.vmem [resolvable:$true] %s31
      %37 = dma.hbm_to_vmem [thread:$0]  %s2, 1024, %s32, [#allocation8], 64, 64, 4
    $region13: #{tpu_custom_call.1} parent=1 // pred_fallthru
      _
    // Predicated region
    $region14: #{tpu_custom_call.1} parent=1 // pred_check
      _
    $region15: #{tpu_custom_call.1} parent=1 // pred_check_branch
      %39 = sbr.rel (0) target = $region17
    $region16: #{tpu_custom_call.1} parent=1 // pred_region
      %40 = dma.done [#allocation5], 128
    $region17: #{tpu_custom_call.1} parent=1 // pred_fallthru
      _
    // Predicated region
    $region18: #{tpu_custom_call.1} parent=1 // pred_check
      _
    $region19: #{tpu_custom_call.1} parent=1 // pred_check_branch
      %42 = sbr.rel (0) target = $region21
    $region20: #{tpu_custom_call.1} parent=1 // pred_region
      %43 = dma.done [#allocation8], 1024
    $region21: #{tpu_custom_call.1} parent=1 // pred_fallthru
      _
    %p45 = scmp.eq.s32.totalorder 0, 0
    // Predicated region
    $region22: #{tpu_custom_call.1} parent=1 // pred_check
      %p46 = pneg %p45
    $region23: #{tpu_custom_call.1} parent=1 // pred_check_branch
      %48 = sbr.rel (%p46) target = $region25
    $region24: #{tpu_custom_call.1} parent=1 // pred_region
      %49 = vst [vmem:[#allocation2] sm:$0xff] 0.0
      %50 = vst [vmem:[#allocation2 + $0x8] sm:$0xff] 0.0
    $region25: #{tpu_custom_call.1} parent=1 // pred_fallthru
      _
    %v51 = vld [vmem:[#allocation2] sm:$0xff]
    %v52 = vld [vmem:[#allocation2 + $0x8] sm:$0xff]
    %v53 = vld [vmem:[#allocation4] sm:$0xf]
    %v54 = vld [vmem:[#allocation4 + $0x4] sm:$0xf]
    %v55 = vld [vmem:[#allocation7] sm:$0xf]
    %v56 = vld [vmem:[#allocation7 + $0x4] sm:$0xf]
    %v57 = vld [vmem:[#allocation7 + $0x8] sm:$0xf]
    %v58 = vld [vmem:[#allocation7 + $0xc] sm:$0xf]
    %v59 = vld [vmem:[#allocation7 + $0x10] sm:$0xf]
    %v60 = vld [vmem:[#allocation7 + $0x14] sm:$0xf]
    %v61 = vld [vmem:[#allocation7 + $0x18] sm:$0xf]
    %v62 = vld [vmem:[#allocation7 + $0x1c] sm:$0xf]
    %v63 = vld [vmem:[#allocation7 + $0x20] sm:$0xf]
    %v64 = vld [vmem:[#allocation7 + $0x24] sm:$0xf]
    %v65 = vld [vmem:[#allocation7 + $0x28] sm:$0xf]
    %v66 = vld [vmem:[#allocation7 + $0x2c] sm:$0xf]
    %v67 = vld [vmem:[#allocation7 + $0x30] sm:$0xf]
    %v68 = vld [vmem:[#allocation7 + $0x34] sm:$0xf]
    %v69 = vld [vmem:[#allocation7 + $0x38] sm:$0xf]
    %v70 = vld [vmem:[#allocation7 + $0x3c] sm:$0xf]
    %v73 = vunpack.c.l.b16 %v53
    %v74 = vunpack.c.l.b16 %v54
    %v75 = vpack.c.b16 %v74, %v73
    %v93 = vunpack.c.l.b16 %v55
    %v94 = vunpack.c.l.b16 %v56
    %v95 = vunpack.c.l.b16 %v57
    %v96 = vunpack.c.l.b16 %v58
    %v97 = vunpack.c.l.b16 %v59
    %v98 = vunpack.c.l.b16 %v60
    %v99 = vunpack.c.l.b16 %v61
    %v100 = vunpack.c.l.b16 %v62
    %v101 = vunpack.c.l.b16 %v63
    %v102 = vunpack.c.l.b16 %v64
    %v103 = vunpack.c.l.b16 %v65
    %v104 = vunpack.c.l.b16 %v66
    %v105 = vunpack.c.l.b16 %v67
    %v106 = vunpack.c.l.b16 %v68
    %v107 = vunpack.c.l.b16 %v69
    %v108 = vunpack.c.l.b16 %v70
    %v109 = vpack.c.b16 %v94, %v93
    %v110 = vpack.c.b16 %v96, %v95
    %v111 = vpack.c.b16 %v98, %v97
    %v112 = vpack.c.b16 %v100, %v99
    %v113 = vpack.c.b16 %v102, %v101
    %v114 = vpack.c.b16 %v104, %v103
    %v115 = vpack.c.b16 %v106, %v105
    %v116 = vpack.c.b16 %v108, %v107
    %125 = vmatprep.subr.bf16.mxu0 0
    %126 = vmatpush1.bf16.msra.mxu0 %v109
    %127 = vmatprep.subr.bf16.mxu0 0
    %128 = vmatpush1.bf16.msra.mxu0 %v110
    %129 = vmatprep.subr.bf16.mxu0 0
    %130 = vmatpush1.bf16.msra.mxu0 %v111
    %131 = vmatprep.subr.bf16.mxu0 0
    %132 = vmatpush1.bf16.msra.mxu0 %v112
    %133 = vmatprep.subr.bf16.mxu0 0
    %134 = vmatpush1.bf16.msra.mxu0 %v113
    %135 = vmatprep.subr.bf16.mxu0 0
    %136 = vmatpush1.bf16.msra.mxu0 %v114
    %137 = vmatprep.subr.bf16.mxu0 0
    %138 = vmatpush1.bf16.msra.mxu0 %v115
    %139 = vmatprep.subr.bf16.mxu0 0
    %140 = vmatpush1.bf16.msra.mxu0 %v116
    %141 = vmatprep.subr.bf16.mxu0 0
    %142 = vmatpush1.bf16.msra.mxu0 0
    %143 = vmatprep.subr.bf16.mxu0 0
    %144 = vmatpush1.bf16.msra.mxu0 0
    %145 = vmatprep.subr.bf16.mxu0 0
    %146 = vmatpush1.bf16.msra.mxu0 0
    %147 = vmatprep.subr.bf16.mxu0 0
    %148 = vmatpush1.bf16.msra.mxu0 0
    %149 = vmatprep.subr.bf16.mxu0 0
    %150 = vmatpush1.bf16.msra.mxu0 0
    %151 = vmatprep.subr.bf16.mxu0 0
    %152 = vmatpush1.bf16.msra.mxu0 0
    %153 = vmatprep.subr.bf16.mxu0 0
    %154 = vmatpush1.bf16.msra.mxu0 0
    %155 = vmatprep.subr.bf16.mxu0 0
    %156 = vmatpush1.bf16.msra.mxu0 0
    %157 = vmatprep.mubr.bf16.mxu0 0
    %158 = vmatmul.mubr.bf16.gmra.mrb[0].mxu0 %v75
    %v159 = vpop.f32.mrb[0].mxu0
    %v160 = vadd.f32 0.0, %v159
    %v161 = vpop.f32.mrb[0].mxu0
    %v162 = vpop.f32.mrb[0].mxu0
    %v163 = vadd.f32 0.0, %v162
    %v164 = vpop.f32.mrb[0].mxu0
    %165 = vdwg.mxu0
    %v166 = vadd.f32 %v51, %v160
    %v167 = vadd.f32 %v52, %v163
    %168 = vst [vmem:[#allocation2] sm:$0xff] %v166
    %169 = vst [vmem:[#allocation2 + $0x8] sm:$0xff] %v167
    // Predicated region
    $region26: #{tpu_custom_call.1} parent=1 // pred_check
      %p170 = pneg %p45
    $region27: #{tpu_custom_call.1} parent=1 // pred_check_branch
      %172 = sbr.rel (%p170) target = $region29
    $region28: #{tpu_custom_call.1} parent=1 // pred_region
      %v173 = vld [vmem:[#allocation2] sm:$0xff]
      %v174 = vld [vmem:[#allocation2 + $0x8] sm:$0xff]
      %s175 = sld [smem:[#allocation3]]
      %v176 = vstv %s175
      %v177 = vmul.f32 %v173, %v176
      %v178 = vmul.f32 %v174, %v176
      %179 = vst [vmem:[#allocation9] sm:$0xff] %v177
      %180 = vst [vmem:[#allocation9 + $0x8] sm:$0xff] %v178
    $region29: #{tpu_custom_call.1} parent=1 // pred_fallthru
      _
    // Predicated region
    $region30: #{tpu_custom_call.1} parent=1 // pred_check
      _
    $region31: #{tpu_custom_call.1} parent=1 // pred_check_branch
      %182 = sbr.rel (0) target = $region33
    $region32: #{tpu_custom_call.1} parent=1 // pred_region
      %s184 = ssub.s32 256, 256
      %185 = vsyncadd [#allocation6], %s184
      %s186 = sshll.u32 [#allocation9], 4
      %s187 = int_to_ptr.vmem [resolvable:$true] %s186
      %192 = dma.vmem_to_hbm [thread:$0]  %s187, 256, %s3, [#allocation6], 128, 128, 8
    $region33: #{tpu_custom_call.1} parent=1 // pred_fallthru
      _
    // Predicated region
    $region34: #{tpu_custom_call.1} parent=1 // pred_check
      _
    $region35: #{tpu_custom_call.1} parent=1 // pred_check_branch
      %194 = sbr.rel (0) target = $region37
    $region36: #{tpu_custom_call.1} parent=1 // pred_region
      %195 = dma.done [#allocation6], 256
    $region37: #{tpu_custom_call.1} parent=1 // pred_fallthru
      _
    %196 = vsyncpa [#allocation5], 1
    %197 = vsyncpa [#allocation8], 1
    %198 = vsyncpa [#allocation6], 1

</llo_original>
